<compile_context>
chip_gen: v6e
topology: v6e:2x2x1
jax: 0.10.0
libtpu: 0.0.40
codegen_flags: <defaults>
</compile_context>

<pallas_src>
import jax
import jax.numpy as jnp
from jax.experimental import pallas as pl
from jax.experimental.pallas import tpu as pltpu

# ---- module constants (from the reference file) ----
NUM_FEATURES_PER_NODE = 7
NUM_NODES = 10
LANE = 128  # TPU lane width


def _round_up(n, m):
    return ((n + m - 1) // m) * m


def _vae_kernel(x_ref, w1_ref, b1_ref, w2_ref, b2_ref, eps_ref,
                h_ref, recon_ref):
    lat_p = w2_ref.shape[0]  # padded latent width (static)

    # h = relu(fc1(x)) -- single fused MXU pass over mu||log_var columns,
    # f32 accumulation, bias + ReLU on the VPU in f32.
    x = x_ref[...]                                           # bf16 (tile_b, K)
    h = jnp.dot(x, w1_ref[...], preferred_element_type=jnp.float32)
    h = jnp.maximum(h + b1_ref[...], 0.0)                    # (tile_b, 2*lat_p)
    h_ref[...] = h                                           # lane-dense store

    # 128-lane-aligned split (no cross-lane shuffles); padded lanes are zero.
    mu = h[:, :lat_p]
    log_var = h[:, lat_p:]

    # reparameterize in f32: z = mu + eps * exp(0.5 * log_var)   (exp on EUP)
    z = mu + eps_ref[...] * jnp.exp(0.5 * log_var)

    # reconstructed = sigmoid(fc2(z)).  Padded rows of w2 are zero, so padded
    # z lanes contribute nothing.
    logits = jnp.dot(z.astype(w2_ref.dtype), w2_ref[...],
                     preferred_element_type=jnp.float32) + b2_ref[...]
    recon_ref[...] = jax.nn.sigmoid(logits)                  # lane-dense store


def prepare_params(params, latent_size):
    """One-time preprocessing (hoisted out of the per-call path): fuse the
    mu/log_var halves of fc1 into one lane-padded weight, pad fc2 to 128
    lanes, and cast matmul weights to bf16 (biases stay f32 -- they are added
    to the f32 accumulator)."""
    input_size = params["w1"].shape[0]
    out_dim = params["w2"].shape[1]
    lat_p = _round_up(latent_size, LANE)
    out_p = _round_up(out_dim, LANE)

    w1 = jnp.zeros((input_size, 2 * lat_p), jnp.float32)
    w1 = w1.at[:, :latent_size].set(params["w1"][:, :latent_size])
    w1 = w1.at[:, lat_p:lat_p + latent_size].set(params["w1"][:, latent_size:])
    b1 = jnp.zeros((1, 2 * lat_p), jnp.float32)
    b1 = b1.at[0, :latent_size].set(params["b1"][:latent_size])
    b1 = b1.at[0, lat_p:lat_p + latent_size].set(params["b1"][latent_size:])

    w2 = jnp.zeros((lat_p, out_p), jnp.float32)
    w2 = w2.at[:latent_size, :out_dim].set(params["w2"])
    b2 = jnp.zeros((1, out_p), jnp.float32)
    b2 = b2.at[0, :out_dim].set(params["b2"])

    return {
        "w1": w1.astype(jnp.bfloat16),
        "b1": b1,
        "w2": w2.astype(jnp.bfloat16),
        "b2": b2,
    }


def vae_forward(x, prepped, eps, latent_size, *, tile_b=512):
    """Fused VAE forward pass.

    x:       (B, input_size) float32
    prepped: output of prepare_params (padded/fused bf16 weights, f32 biases)
    eps:     (B, latent_size) float32  (the randn_like draw)
    Returns (reconstructed_x, mu, log_var) matching the PyTorch module.
    """
    B, K = x.shape
    w1, b1, w2, b2 = prepped["w1"], prepped["b1"], prepped["w2"], prepped["b2"]
    h_p = w1.shape[1]            # 2 * lat_p
    lat_p = w2.shape[0]
    out_p = w2.shape[1]
    out_dim = NUM_NODES * NUM_FEATURES_PER_NODE

    # Batch tile: double-buffered (x, eps, h, recon) tiles at tile_b=512 are
    # ~3 MiB -> safe on v7x's 64 MiB VMEM (32 MiB scoped default).
    tile_b = B if B <= tile_b else tile_b
    grid = (pl.cdiv(B, tile_b),)

    x_bf = x.astype(jnp.bfloat16)                  # halves x DMA bytes
    eps_p = jnp.pad(eps, ((0, 0), (0, lat_p - latent_size)))

    cost = pl.CostEstimate(
        flops=2 * B * K * 2 * latent_size + 2 * B * latent_size * out_dim,
        transcendentals=B * (latent_size + out_dim),
        bytes_accessed=(x_bf.size * 2 + eps_p.size * 4 + w1.size * 2
                        + b1.size * 4 + w2.size * 2 + b2.size * 4
                        + B * h_p * 4 + B * out_p * 4),
    )

    batch_block = lambda i: (i, 0)   # tiles move along the batch axis
    const_block = lambda i: (0, 0)   # weights/biases stay VMEM-resident

    h_out, recon_p = pl.pallas_call(
        _vae_kernel,
        grid=grid,
        in_specs=[
            pl.BlockSpec((tile_b, K), batch_block),     # x (bf16)
            pl.BlockSpec((K, h_p), const_block),        # w1 (fused, padded)
            pl.BlockSpec((1, h_p), const_block),        # b1
            pl.BlockSpec((lat_p, out_p), const_block),  # w2 (padded)
            pl.BlockSpec((1, out_p), const_block),      # b2
            pl.BlockSpec((tile_b, lat_p), batch_block), # eps (lane-padded)
        ],
        out_specs=(
            pl.BlockSpec((tile_b, h_p), batch_block),   # mu || log_var slab
            pl.BlockSpec((tile_b, out_p), batch_block), # reconstruction slab
        ),
        out_shape=(
            jax.ShapeDtypeStruct((B, h_p), jnp.float32),
            jax.ShapeDtypeStruct((B, out_p), jnp.float32),
        ),
        compiler_params=pltpu.CompilerParams(
            dimension_semantics=("parallel",)),  # shard batch over v7x's 2 TCs
        cost_estimate=cost,
    )(x_bf, w1, b1, w2, b2, eps_p)

    mu = h_out[:, :latent_size]
    log_var = h_out[:, lat_p:lat_p + latent_size]
    reconstructed_x = recon_p[:, :out_dim].reshape(
        -1, NUM_NODES, NUM_FEATURES_PER_NODE)
    return reconstructed_x, mu, log_var


def init_params(key, input_size, latent_size):
    """Deterministic synthetic parameter init (shapes match nn.Linear, stored
    transposed as (in, out))."""
    k1, k2, k3, k4 = jax.random.split(key, 4)
    out_dim = NUM_NODES * NUM_FEATURES_PER_NODE
    b1_bound = 1.0 / jnp.sqrt(jnp.float32(input_size))
    b2_bound = 1.0 / jnp.sqrt(jnp.float32(latent_size))
    return {
        "w1": jax.random.uniform(k1, (input_size, 2 * latent_size),
                                 jnp.float32, -b1_bound, b1_bound),
        "b1": jax.random.uniform(k2, (2 * latent_size,),
                                 jnp.float32, -b1_bound, b1_bound),
        "w2": jax.random.uniform(k3, (latent_size, out_dim),
                                 jnp.float32, -b2_bound, b2_bound),
        "b2": jax.random.uniform(k4, (out_dim,),
                                 jnp.float32, -b2_bound, b2_bound),
    }


if __name__ == "__main__":
    key = jax.random.PRNGKey(0)
    k_param, k_x, k_eps = jax.random.split(key, 3)

    batch = 8
    input_size = NUM_NODES * NUM_FEATURES_PER_NODE  # 70 (flattened features)
    latent_size = 16

    params = init_params(k_param, input_size, latent_size)
    prepped = prepare_params(params, latent_size)   # one-time weight prep
    x = jax.random.normal(k_x, (batch, input_size), jnp.float32)
    # torch.randn_like(std) equivalent (deterministic key instead of global RNG)
    eps = jax.random.normal(k_eps, (batch, latent_size), jnp.float32)

    reconstructed_x, mu, log_var = vae_forward(x, prepped, eps, latent_size)
    jax.block_until_ready((reconstructed_x, mu, log_var))

    # Reference in plain JAX with the same bf16-input / f32-accumulate matmuls.
    xb = x.astype(jnp.bfloat16)
    w1b = params["w1"].astype(jnp.bfloat16)
    w2b = params["w2"].astype(jnp.bfloat16)
    h_ref = jax.nn.relu(
        jnp.dot(xb, w1b, preferred_element_type=jnp.float32) + params["b1"])
    mu_ref, lv_ref = h_ref[:, :latent_size], h_ref[:, latent_size:]
    z_ref = mu_ref + eps * jnp.exp(0.5 * lv_ref)
    rec_ref = jax.nn.sigmoid(
        jnp.dot(z_ref.astype(jnp.bfloat16), w2b,
                preferred_element_type=jnp.float32) + params["b2"]
    ).reshape(-1, NUM_NODES, NUM_FEATURES_PER_NODE)

    assert reconstructed_x.shape == (batch, NUM_NODES, NUM_FEATURES_PER_NODE)
    assert mu.shape == (batch, latent_size)
    assert log_var.shape == (batch, latent_size)
    assert jnp.allclose(mu, mu_ref, atol=1e-4)
    assert jnp.allclose(log_var, lv_ref, atol=1e-4)
    assert jnp.allclose(reconstructed_x, rec_ref, atol=2e-3)

    print("KERNEL_OK")
</pallas_src>

<mosaic_0001>
module attributes {stable_mosaic.version = 11 : i64} {
  func.func @_vae_kernel(%arg0: i32, %arg1: memref<8x70xbf16, #tpu.memory_space<vmem>>, %arg2: memref<70x256xbf16, #tpu.memory_space<vmem>>, %arg3: memref<1x256xf32, #tpu.memory_space<vmem>>, %arg4: memref<128x128xbf16, #tpu.memory_space<vmem>>, %arg5: memref<1x128xf32, #tpu.memory_space<vmem>>, %arg6: memref<8x128xf32, #tpu.memory_space<vmem>>, %arg7: memref<8x256xf32, #tpu.memory_space<vmem>>, %arg8: memref<8x128xf32, #tpu.memory_space<vmem>>) attributes {dimension_semantics = [#tpu.dimension_semantics<parallel>], iteration_bounds = array<i64: 1>, scalar_prefetch = 0 : i64, scratch_operands = 0 : i64, tpu.core_type = #tpu.core_type<tc>, window_params = [{transform_indices = @transform_0, window_bounds = array<i64: 8, 70>}, {pipeline_mode = #tpu.pipeline_mode<synchronous>, transform_indices = @transform_1, window_bounds = array<i64: 70, 256>}, {pipeline_mode = #tpu.pipeline_mode<synchronous>, transform_indices = @transform_2, window_bounds = array<i64: 1, 256>}, {pipeline_mode = #tpu.pipeline_mode<synchronous>, transform_indices = @transform_3, window_bounds = array<i64: 128, 128>}, {pipeline_mode = #tpu.pipeline_mode<synchronous>, transform_indices = @transform_4, window_bounds = array<i64: 1, 128>}, {transform_indices = @transform_5, window_bounds = array<i64: 8, 128>}, {transform_indices = @transform_6, window_bounds = array<i64: 8, 256>}, {transform_indices = @transform_7, window_bounds = array<i64: 8, 128>}]} {
    %c0 = arith.constant 0 : index
    %c0_0 = arith.constant 0 : index
    %0 = vector.load %arg1[%c0, %c0_0] : memref<8x70xbf16, #tpu.memory_space<vmem>>, vector<8x70xbf16>
    %c0_1 = arith.constant 0 : index
    %c0_2 = arith.constant 0 : index
    %1 = vector.load %arg2[%c0_1, %c0_2] : memref<70x256xbf16, #tpu.memory_space<vmem>>, vector<70x256xbf16>
    %cst = arith.constant dense<0.000000e+00> : vector<8x256xf32>
    %2 = tpu.matmul %0, %1, %cst {dimension_numbers = #tpu.dot_dimension_numbers<[1], [0], [0], [1], [0, 0, 1, 1], [], []>} : vector<8x70xbf16>, vector<70x256xbf16>, vector<8x256xf32> -> vector<8x256xf32>
    %c0_3 = arith.constant 0 : index
    %c0_4 = arith.constant 0 : index
    %3 = vector.load %arg3[%c0_3, %c0_4] : memref<1x256xf32, #tpu.memory_space<vmem>>, vector<1x256xf32>
    %4 = vector.broadcast %3 : vector<1x256xf32> to vector<8x256xf32>
    %5 = arith.addf %2, %4 : vector<8x256xf32>
    %cst_5 = arith.constant 0.000000e+00 : f32
    %6 = vector.broadcast %cst_5 : f32 to vector<8x256xf32>
    %7 = arith.maximumf %5, %6 : vector<8x256xf32>
    %c0_6 = arith.constant 0 : index
    %c0_7 = arith.constant 0 : index
    %8 = vector.load %arg7[%c0_6, %c0_7] : memref<8x256xf32, #tpu.memory_space<vmem>>, vector<8x256xf32>
    tpu.vector_store %arg7[%c0_6, %c0_7], %7 {strides = array<i32>} : memref<8x256xf32, #tpu.memory_space<vmem>>, vector<8x256xf32>,
    %9 = vector.extract_strided_slice %7 {offsets = [0, 0], sizes = [8, 128], strides = [1, 1]} : vector<8x256xf32> to vector<8x128xf32>
    %10 = vector.extract_strided_slice %7 {offsets = [0, 128], sizes = [8, 128], strides = [1, 1]} : vector<8x256xf32> to vector<8x128xf32>
    %c0_8 = arith.constant 0 : index
    %c0_9 = arith.constant 0 : index
    %11 = vector.load %arg6[%c0_8, %c0_9] : memref<8x128xf32, #tpu.memory_space<vmem>>, vector<8x128xf32>
    %cst_10 = arith.constant 5.000000e-01 : f32
    %12 = vector.broadcast %cst_10 : f32 to vector<8x128xf32>
    %13 = arith.mulf %12, %10 : vector<8x128xf32>
    %14 = math.exp %13 : vector<8x128xf32>
    %15 = arith.mulf %11, %14 : vector<8x128xf32>
    %16 = arith.addf %9, %15 : vector<8x128xf32>
    %17 = arith.truncf %16 : vector<8x128xf32> to vector<8x128xbf16>
    %c0_11 = arith.constant 0 : index
    %c0_12 = arith.constant 0 : index
    %18 = vector.load %arg4[%c0_11, %c0_12] : memref<128x128xbf16, #tpu.memory_space<vmem>>, vector<128x128xbf16>
    %cst_13 = arith.constant dense<0.000000e+00> : vector<8x128xf32>
    %19 = tpu.matmul %17, %18, %cst_13 {dimension_numbers = #tpu.dot_dimension_numbers<[1], [0], [0], [1], [0, 0, 1, 1], [], []>} : vector<8x128xbf16>, vector<128x128xbf16>, vector<8x128xf32> -> vector<8x128xf32>
    %c0_14 = arith.constant 0 : index
    %c0_15 = arith.constant 0 : index
    %20 = vector.load %arg5[%c0_14, %c0_15] : memref<1x128xf32, #tpu.memory_space<vmem>>, vector<1x128xf32>
    %21 = vector.broadcast %20 : vector<1x128xf32> to vector<8x128xf32>
    %22 = arith.addf %19, %21 : vector<8x128xf32>
    %23 = arith.negf %22 : vector<8x128xf32>
    %24 = math.exp %23 : vector<8x128xf32>
    %cst_16 = arith.constant 1.000000e+00 : f32
    %25 = vector.broadcast %cst_16 : f32 to vector<8x128xf32>
    %26 = arith.addf %25, %24 : vector<8x128xf32>
    %27 = arith.divf %25, %26 : vector<8x128xf32>
    %c0_17 = arith.constant 0 : index
    %c0_18 = arith.constant 0 : index
    %28 = vector.load %arg8[%c0_17, %c0_18] : memref<8x128xf32, #tpu.memory_space<vmem>>, vector<8x128xf32>
    tpu.vector_store %arg8[%c0_17, %c0_18], %27 {strides = array<i32>} : memref<8x128xf32, #tpu.memory_space<vmem>>, vector<8x128xf32>,
    return
  }
  func.func @transform_0(%arg0: i32) -> (i32, i32) {
    %c0_i32 = arith.constant 0 : i32
    %c0_i32_0 = arith.constant 0 : i32
    return %arg0, %c0_i32 : i32, i32
  }
  func.func @transform_1(%arg0: i32) -> (i32, i32) {
    %c0_i32 = arith.constant 0 : i32
    %c0_i32_0 = arith.constant 0 : i32
    %c0_i32_1 = arith.constant 0 : i32
    return %c0_i32, %c0_i32_0 : i32, i32
  }
  func.func @transform_2(%arg0: i32) -> (i32, i32) {
    %c0_i32 = arith.constant 0 : i32
    %c0_i32_0 = arith.constant 0 : i32
    %c0_i32_1 = arith.constant 0 : i32
    return %c0_i32, %c0_i32_0 : i32, i32
  }
  func.func @transform_3(%arg0: i32) -> (i32, i32) {
    %c0_i32 = arith.constant 0 : i32
    %c0_i32_0 = arith.constant 0 : i32
    %c0_i32_1 = arith.constant 0 : i32
    return %c0_i32, %c0_i32_0 : i32, i32
  }
  func.func @transform_4(%arg0: i32) -> (i32, i32) {
    %c0_i32 = arith.constant 0 : i32
    %c0_i32_0 = arith.constant 0 : i32
    %c0_i32_1 = arith.constant 0 : i32
    return %c0_i32, %c0_i32_0 : i32, i32
  }
  func.func @transform_5(%arg0: i32) -> (i32, i32) {
    %c0_i32 = arith.constant 0 : i32
    %c0_i32_0 = arith.constant 0 : i32
    return %arg0, %c0_i32 : i32, i32
  }
  func.func @transform_6(%arg0: i32) -> (i32, i32) {
    %c0_i32 = arith.constant 0 : i32
    %c0_i32_0 = arith.constant 0 : i32
    return %arg0, %c0_i32 : i32, i32
  }
  func.func @transform_7(%arg0: i32) -> (i32, i32) {
    %c0_i32 = arith.constant 0 : i32
    %c0_i32_0 = arith.constant 0 : i32
    return %arg0, %c0_i32 : i32, i32
  }
}

</mosaic_0001>

<llo_original>
// kernel: tpu_custom_call.1
$region0: #{tpu_custom_call.1}
  #allocation0 [shape = 'u32[]', space=smem, size = 0x4, offset = 0x4, fixed_abs, tag = 'smem constant byte address 0x4 - core index']
  #allocation1 [shape = 'u32[144,128]{1,0:T(1,128)}', space=vmem, size = 0x12000, scoped, tag = 'internal scratch']
  %s0 = inlined_call_operand.hbm [shape: bf16[8,70], index: 0, kind: input, shape index: {}]
  %s1 = inlined_call_operand.hbm [shape: bf16[70,256], index: 1, kind: input, shape index: {}]
  %s2 = inlined_call_operand.hbm [shape: f32[1,256], index: 2, kind: input, shape index: {}]
  %s3 = inlined_call_operand.hbm [shape: bf16[128,128], index: 3, kind: input, shape index: {}]
  %s4 = inlined_call_operand.vmem [shape: f32[1,128], index: 4, kind: input, shape index: {}]
  %s5 = inlined_call_operand.vmem [shape: f32[8,128], index: 5, kind: input, shape index: {}]
  %s6 = inlined_call_operand.hbm [shape: f32[8,256], index: 6, kind: output, shape index: {0}]
  %s7 = inlined_call_operand.hbm [shape: f32[8,128], index: 7, kind: output, shape index: {1}]
  %8 = xla_tuple %s6, %s7
  %s9 = sld [smem:[#allocation0]]
  $region58: #{tpu_custom_call.1} parent=0
    _
  %s11 = ssub.s32 1, %s9
  %s12 = scalar_select 0, %s11, %s9
  $region1: #{tpu_custom_call.1} parent=0
    #allocation2 [shape = 'u8[2048]{0}', space=vmem, size = 0x800, scoped, tag = 'input window, operand 0, single buffered']
    #allocation3 [shape = 's32[1]{0}', space=sflag, size = 0x4, scoped, tag = 'scoped memory for tpu_custom_call.1']
    #allocation4 [shape = 's32[1]{0}', space=sflag, size = 0x4, scoped, tag = 'scoped memory for tpu_custom_call.1']
    #allocation5 [shape = 'u8[36864]{0}', space=vmem, size = 0x9000, scoped, tag = 'input window, operand 1, single buffered']
    #allocation6 [shape = 's32[1]{0}', space=sflag, size = 0x4, scoped, tag = 'scoped memory for tpu_custom_call.1']
    #allocation7 [shape = 'u8[1024]{0}', space=vmem, size = 0x400, scoped, tag = 'input window, operand 2, single buffered']
    #allocation8 [shape = 'u8[32768]{0}', space=vmem, size = 0x8000, scoped, tag = 'input window, operand 3, single buffered']
    #allocation9 [shape = 's32[1]{0}', space=sflag, size = 0x4, scoped, tag = 'scoped memory for tpu_custom_call.1']
    #allocation10 [shape = 'u8[8192]{0}', space=vmem, size = 0x2000, scoped, tag = 'output window, operand 0, single buffered']
    #allocation11 [shape = 'u8[4096]{0}', space=vmem, size = 0x1000, scoped, tag = 'output window, operand 1, single buffered']
    #allocation12 [shape = 's32[1]{0}', space=sflag, size = 0x4, scoped, tag = 'scoped memory for tpu_custom_call.1']
    %13 = vsyncpa [#allocation3], 0
    %14 = vsyncpa [#allocation6], 0
    %15 = vsyncpa [#allocation9], 0
    %16 = vsyncpa [#allocation4], 0
    %17 = vsyncpa [#allocation12], 0
    // Predicated region
    $region2: #{tpu_custom_call.1} parent=1 // pred_check
      _
    $region3: #{tpu_custom_call.1} parent=1 // pred_check_branch
      %19 = sbr.rel (0) target = $region5
    $region4: #{tpu_custom_call.1} parent=1 // pred_region
      %s21 = ssub.s32 64, 64
      %22 = vsyncadd [#allocation3], %s21
      %s24 = sshll.u32 [#allocation2], 4
      %s25 = int_to_ptr.vmem [resolvable:$true] %s24
      %27 = dma.hbm_to_vmem [thread:$0]  %s0, 64, %s25, [#allocation3]
    $region5: #{tpu_custom_call.1} parent=1 // pred_fallthru
      _
    // Predicated region
    $region6: #{tpu_custom_call.1} parent=1 // pred_check
      _
    $region7: #{tpu_custom_call.1} parent=1 // pred_check_branch
      %29 = sbr.rel (0) target = $region9
    $region8: #{tpu_custom_call.1} parent=1 // pred_region
      %s31 = ssub.s32 1152, 1152
      %32 = vsyncadd [#allocation6], %s31
      %s33 = sshll.u32 [#allocation5], 4
      %s34 = int_to_ptr.vmem [resolvable:$true] %s33
      %39 = dma.hbm_to_vmem [thread:$0]  %s1, 1152, %s34, [#allocation6], 128, 128, 8
    $region9: #{tpu_custom_call.1} parent=1 // pred_fallthru
      _
    // Predicated region
    $region10: #{tpu_custom_call.1} parent=1 // pred_check
      _
    $region11: #{tpu_custom_call.1} parent=1 // pred_check_branch
      %41 = sbr.rel (0) target = $region13
    $region12: #{tpu_custom_call.1} parent=1 // pred_region
      %s43 = ssub.s32 32, 32
      %44 = vsyncadd [#allocation6], %s43
      %s46 = sshll.u32 [#allocation7], 4
      %s47 = int_to_ptr.vmem [resolvable:$true] %s46
      %49 = dma.hbm_to_vmem [thread:$0]  %s2, 32, %s47, [#allocation6]
    $region13: #{tpu_custom_call.1} parent=1 // pred_fallthru
      _
    // Predicated region
    $region14: #{tpu_custom_call.1} parent=1 // pred_check
      _
    $region15: #{tpu_custom_call.1} parent=1 // pred_check_branch
      %51 = sbr.rel (0) target = $region17
    $region16: #{tpu_custom_call.1} parent=1 // pred_region
      %s53 = ssub.s32 1024, 1024
      %54 = vsyncadd [#allocation9], %s53
      %s55 = sshll.u32 [#allocation8], 4
      %s56 = int_to_ptr.vmem [resolvable:$true] %s55
      %61 = dma.hbm_to_vmem [thread:$0]  %s3, 1024, %s56, [#allocation9], 64, 64, 4
    $region17: #{tpu_custom_call.1} parent=1 // pred_fallthru
      _
    // Predicated region
    $region18: #{tpu_custom_call.1} parent=1 // pred_check
      _
    $region19: #{tpu_custom_call.1} parent=1 // pred_check_branch
      %63 = sbr.rel (0) target = $region21
    $region20: #{tpu_custom_call.1} parent=1 // pred_region
      _
    $region21: #{tpu_custom_call.1} parent=1 // pred_fallthru
      _
    // Predicated region
    $region22: #{tpu_custom_call.1} parent=1 // pred_check
      _
    $region23: #{tpu_custom_call.1} parent=1 // pred_check_branch
      %65 = sbr.rel (0) target = $region25
    $region24: #{tpu_custom_call.1} parent=1 // pred_region
      _
    $region25: #{tpu_custom_call.1} parent=1 // pred_fallthru
      _
    // Predicated region
    $region26: #{tpu_custom_call.1} parent=1 // pred_check
      _
    $region27: #{tpu_custom_call.1} parent=1 // pred_check_branch
      %67 = sbr.rel (0) target = $region29
    $region28: #{tpu_custom_call.1} parent=1 // pred_region
      %68 = dma.done [#allocation3], 64
    $region29: #{tpu_custom_call.1} parent=1 // pred_fallthru
      _
    // Predicated region
    $region30: #{tpu_custom_call.1} parent=1 // pred_check
      _
    $region31: #{tpu_custom_call.1} parent=1 // pred_check_branch
      %70 = sbr.rel (0) target = $region33
    $region32: #{tpu_custom_call.1} parent=1 // pred_region
      %71 = dma.done [#allocation6], 1152
    $region33: #{tpu_custom_call.1} parent=1 // pred_fallthru
      _
    // Predicated region
    $region34: #{tpu_custom_call.1} parent=1 // pred_check
      _
    $region35: #{tpu_custom_call.1} parent=1 // pred_check_branch
      %73 = sbr.rel (0) target = $region37
    $region36: #{tpu_custom_call.1} parent=1 // pred_region
      %74 = dma.done [#allocation6], 32
    $region37: #{tpu_custom_call.1} parent=1 // pred_fallthru
      _
    // Predicated region
    $region38: #{tpu_custom_call.1} parent=1 // pred_check
      _
    $region39: #{tpu_custom_call.1} parent=1 // pred_check_branch
      %76 = sbr.rel (0) target = $region41
    $region40: #{tpu_custom_call.1} parent=1 // pred_region
      %77 = dma.done [#allocation9], 1024
    $region41: #{tpu_custom_call.1} parent=1 // pred_fallthru
      _
    %v79 = vld [vmem:[#allocation2] sm:$0xf]
    %v80 = vld [vmem:[#allocation5] sm:$0xff]
    %v81 = vld [vmem:[#allocation5 + $0x8] sm:$0xff]
    %v82 = vld [vmem:[#allocation5 + $0x10] sm:$0xff]
    %v83 = vld [vmem:[#allocation5 + $0x18] sm:$0xff]
    %v84 = vld [vmem:[#allocation5 + $0x20] sm:$0xff]
    %v85 = vld [vmem:[#allocation5 + $0x28] sm:$0xff]
    %v86 = vld [vmem:[#allocation5 + $0x30] sm:$0xff]
    %v87 = vld [vmem:[#allocation5 + $0x38] sm:$0xff]
    %v88 = vld [vmem:[#allocation5 + $0x40] sm:$0x77]
    %v89 = vld [vmem:[#allocation7] sm:$0x3]
    %v91 = vlaneseq
    %v92 = vshrl.u32 %v91, 7
    %v93 = vsub.s32 0, %v92
    %v94 = vrot.slane %v89, %v93
    %v95 = vlaneseq
    %v96 = vshrl.u32 %v95, 7
    %v97 = vsub.s32 1, %v96
    %v98 = vrot.slane %v89, %v97
    %v110 = vunpack.c.l.b16 %v80
    %v111 = vunpack.c.h.b16 %v80
    %v112 = vunpack.c.l.b16 %v81
    %v113 = vunpack.c.h.b16 %v81
    %v114 = vunpack.c.l.b16 %v82
    %v115 = vunpack.c.h.b16 %v82
    %v116 = vunpack.c.l.b16 %v83
    %v117 = vunpack.c.h.b16 %v83
    %v118 = vunpack.c.l.b16 %v84
    %v119 = vunpack.c.h.b16 %v84
    %v120 = vunpack.c.l.b16 %v85
    %v121 = vunpack.c.h.b16 %v85
    %v122 = vunpack.c.l.b16 %v86
    %v123 = vunpack.c.h.b16 %v86
    %v124 = vunpack.c.l.b16 %v87
    %v125 = vunpack.c.h.b16 %v87
    %v126 = vunpack.c.l.b16 %v88
    %v127 = vunpack.c.h.b16 %v88
    %v128 = vpack.c.b16 %v112, %v110
    %v129 = vpack.c.b16 %v113, %v111
    %v130 = vpack.c.b16 %v116, %v114
    %v131 = vpack.c.b16 %v117, %v115
    %v132 = vpack.c.b16 %v120, %v118
    %v133 = vpack.c.b16 %v121, %v119
    %v134 = vpack.c.b16 %v124, %v122
    %v135 = vpack.c.b16 %v125, %v123
    %v136 = vpack.c.b16 %v126, %v126
    %v137 = vpack.c.b16 %v127, %v127
    %vm146 = vcmask 572416
    %v148 = vsel %vm146, %v79, 0
    %vm150 = vcmask 1042432
    %v152 = vsel %vm150, %v136, 0
    %v155 = vsel %vm150, %v137, 0
    %157 = vmatprep.subr.bf16.mxu0 0
    %158 = vmatpush1.bf16.msra.mxu0 0
    %159 = vmatprep.subr.bf16.mxu0 0
    %160 = vmatpush1.bf16.msra.mxu0 0
    %161 = vmatprep.subr.bf16.mxu0 0
    %162 = vmatpush1.bf16.msra.mxu0 0
    %163 = vmatprep.subr.bf16.mxu0 %v155
    %164 = vmatpush1.bf16.msra.mxu0 %v152
    %165 = vmatprep.subr.bf16.mxu0 %v135
    %166 = vmatpush1.bf16.msra.mxu0 %v134
    %167 = vmatprep.subr.bf16.mxu0 %v133
    %168 = vmatpush1.bf16.msra.mxu0 %v132
    %169 = vmatprep.subr.bf16.mxu0 %v131
    %170 = vmatpush1.bf16.msra.mxu0 %v130
    %171 = vmatprep.subr.bf16.mxu0 %v129
    %172 = vmatpush1.bf16.msra.mxu0 %v128
    %173 = vmatprep.subr.bf16.mxu0 0
    %174 = vmatpush2.bf16.msra.mxu0 0
    %175 = vmatprep.subr.bf16.mxu0 0
    %176 = vmatpush2.bf16.msra.mxu0 0
    %177 = vmatprep.subr.bf16.mxu0 0
    %178 = vmatpush2.bf16.msra.mxu0 0
    %179 = vmatprep.subr.bf16.mxu0 0
    %180 = vmatpush2.bf16.msra.mxu0 0
    %181 = vmatprep.subr.bf16.mxu0 0
    %182 = vmatpush2.bf16.msra.mxu0 0
    %183 = vmatprep.subr.bf16.mxu0 0
    %184 = vmatpush2.bf16.msra.mxu0 0
    %185 = vmatprep.subr.bf16.mxu0 0
    %186 = vmatpush2.bf16.msra.mxu0 0
    %187 = vmatprep.subr.bf16.mxu0 0
    %188 = vmatpush2.bf16.msra.mxu0 0
    %189 = vmatprep.mubr.bf16.mxu0 0
    %190 = vmatmul.mubr.bf16.gmra.mxu0 %v148
    %v191 = vpop.f32.mrf.mxu0
    %v192 = vadd.f32 %v94, %v191
    %v193 = vpop.f32.mrf.mxu0
    %v194 = vadd.f32 %v98, %v193
    %v195 = vpop.f32.mrf.mxu0
    %v196 = vpop.f32.mrf.mxu0
    %197 = vdwg.mxu0
    %v198 = vmax.f32 %v192, 0.0
    %v199 = vmax.f32 %v194, 0.0
    %200 = vst [vmem:[#allocation10] sm:$0xff] %v198
    %201 = vst [vmem:[#allocation10 + $0x8] sm:$0xff] %v199
    %v202 = vld [vmem:[%s5] sm:$0xff]
    %v203 = vmul.f32 %v199, 0.5
    %v204 = vmul.f32 %v203, 1.442695
    %v205 = vpow.pop %v204
    %v206 = vmul.f32 %v202, %v205
    %v207 = vadd.f32 %v198, %v206
    %v208 = vpack.c.bf16 %v207, %v207
    %v209 = vld [vmem:[#allocation8] sm:$0xf]
    %v210 = vld [vmem:[#allocation8 + $0x4] sm:$0xf]
    %v211 = vld [vmem:[#allocation8 + $0x8] sm:$0xf]
    %v212 = vld [vmem:[#allocation8 + $0xc] sm:$0xf]
    %v213 = vld [vmem:[#allocation8 + $0x10] sm:$0xf]
    %v214 = vld [vmem:[#allocation8 + $0x14] sm:$0xf]
    %v215 = vld [vmem:[#allocation8 + $0x18] sm:$0xf]
    %v216 = vld [vmem:[#allocation8 + $0x1c] sm:$0xf]
    %v217 = vld [vmem:[#allocation8 + $0x20] sm:$0xf]
    %v218 = vld [vmem:[#allocation8 + $0x24] sm:$0xf]
    %v219 = vld [vmem:[#allocation8 + $0x28] sm:$0xf]
    %v220 = vld [vmem:[#allocation8 + $0x2c] sm:$0xf]
    %v221 = vld [vmem:[#allocation8 + $0x30] sm:$0xf]
    %v222 = vld [vmem:[#allocation8 + $0x34] sm:$0xf]
    %v223 = vld [vmem:[#allocation8 + $0x38] sm:$0xf]
    %v224 = vld [vmem:[#allocation8 + $0x3c] sm:$0xf]
    %v225 = vld [vmem:[%s4] sm:$0x1]
    %v227 = vlaneseq
    %v228 = vshrl.u32 %v227, 7
    %v229 = vsub.s32 0, %v228
    %v230 = vrot.slane %v225, %v229
    %v248 = vunpack.c.l.b16 %v209
    %v249 = vunpack.c.l.b16 %v210
    %v250 = vunpack.c.l.b16 %v211
    %v251 = vunpack.c.l.b16 %v212
    %v252 = vunpack.c.l.b16 %v213
    %v253 = vunpack.c.l.b16 %v214
    %v254 = vunpack.c.l.b16 %v215
    %v255 = vunpack.c.l.b16 %v216
    %v256 = vunpack.c.l.b16 %v217
    %v257 = vunpack.c.l.b16 %v218
    %v258 = vunpack.c.l.b16 %v219
    %v259 = vunpack.c.l.b16 %v220
    %v260 = vunpack.c.l.b16 %v221
    %v261 = vunpack.c.l.b16 %v222
    %v262 = vunpack.c.l.b16 %v223
    %v263 = vunpack.c.l.b16 %v224
    %v264 = vpack.c.b16 %v249, %v248
    %v265 = vpack.c.b16 %v251, %v250
    %v266 = vpack.c.b16 %v253, %v252
    %v267 = vpack.c.b16 %v255, %v254
    %v268 = vpack.c.b16 %v257, %v256
    %v269 = vpack.c.b16 %v259, %v258
    %v270 = vpack.c.b16 %v261, %v260
    %v271 = vpack.c.b16 %v263, %v262
    %280 = vmatprep.subr.bf16.mxu0 0
    %281 = vmatpush1.bf16.msra.mxu0 %v271
    %282 = vmatprep.subr.bf16.mxu0 0
    %283 = vmatpush1.bf16.msra.mxu0 %v270
    %284 = vmatprep.subr.bf16.mxu0 0
    %285 = vmatpush1.bf16.msra.mxu0 %v269
    %286 = vmatprep.subr.bf16.mxu0 0
    %287 = vmatpush1.bf16.msra.mxu0 %v268
    %288 = vmatprep.subr.bf16.mxu0 0
    %289 = vmatpush1.bf16.msra.mxu0 %v267
    %290 = vmatprep.subr.bf16.mxu0 0
    %291 = vmatpush1.bf16.msra.mxu0 %v266
    %292 = vmatprep.subr.bf16.mxu0 0
    %293 = vmatpush1.bf16.msra.mxu0 %v265
    %294 = vmatprep.subr.bf16.mxu0 0
    %295 = vmatpush1.bf16.msra.mxu0 %v264
    %296 = vmatprep.subr.bf16.mxu0 0
    %297 = vmatpush2.bf16.msra.mxu0 0
    %298 = vmatprep.subr.bf16.mxu0 0
    %299 = vmatpush2.bf16.msra.mxu0 0
    %300 = vmatprep.subr.bf16.mxu0 0
    %301 = vmatpush2.bf16.msra.mxu0 0
    %302 = vmatprep.subr.bf16.mxu0 0
    %303 = vmatpush2.bf16.msra.mxu0 0
    %304 = vmatprep.subr.bf16.mxu0 0
    %305 = vmatpush2.bf16.msra.mxu0 0
    %306 = vmatprep.subr.bf16.mxu0 0
    %307 = vmatpush2.bf16.msra.mxu0 0
    %308 = vmatprep.subr.bf16.mxu0 0
    %309 = vmatpush2.bf16.msra.mxu0 0
    %310 = vmatprep.subr.bf16.mxu0 0
    %311 = vmatpush2.bf16.msra.mxu0 0
    %312 = vmatprep.mubr.bf16.mxu0 0
    %313 = vmatmul.mubr.bf16.gmra.mxu0 %v208
    %v314 = vpop.f32.mrf.mxu0
    %v315 = vadd.f32 %v230, %v314
    %v316 = vpop.f32.mrf.mxu0
    %v317 = vpop.f32.mrf.mxu0
    %v318 = vpop.f32.mrf.mxu0
    %319 = vdwg.mxu0
    %v320 = vxor.u32 %v315, 2147483648
    %v321 = vmul.f32 %v320, 1.442695
    %v322 = vpow.pop %v321
    %v323 = vadd.f32 %v322, 1.0
    %v324 = vrcp.pop %v323
    %v325 = vmul.f32 1.0, %v324
    %326 = vst [vmem:[#allocation11] sm:$0xff] %v325
    // Predicated region
    $region42: #{tpu_custom_call.1} parent=1 // pred_check
      _
    $region43: #{tpu_custom_call.1} parent=1 // pred_check_branch
      %328 = sbr.rel (0) target = $region45
    $region44: #{tpu_custom_call.1} parent=1 // pred_region
      %s330 = ssub.s32 256, 256
      %331 = vsyncadd [#allocation4], %s330
      %s333 = sshll.u32 [#allocation10], 4
      %s334 = int_to_ptr.vmem [resolvable:$true] %s333
      %336 = dma.vmem_to_hbm [thread:$0]  %s334, 256, %s6, [#allocation4]
    $region45: #{tpu_custom_call.1} parent=1 // pred_fallthru
      _
    // Predicated region
    $region46: #{tpu_custom_call.1} parent=1 // pred_check
      _
    $region47: #{tpu_custom_call.1} parent=1 // pred_check_branch
      %338 = sbr.rel (0) target = $region49
    $region48: #{tpu_custom_call.1} parent=1 // pred_region
      %s340 = ssub.s32 128, 128
      %341 = vsyncadd [#allocation12], %s340
      %s343 = sshll.u32 [#allocation11], 4
      %s344 = int_to_ptr.vmem [resolvable:$true] %s343
      %346 = dma.vmem_to_hbm [thread:$0]  %s344, 128, %s7, [#allocation12]
    $region49: #{tpu_custom_call.1} parent=1 // pred_fallthru
      _
    // Predicated region
    $region50: #{tpu_custom_call.1} parent=1 // pred_check
      _
    $region51: #{tpu_custom_call.1} parent=1 // pred_check_branch
      %348 = sbr.rel (0) target = $region53
    $region52: #{tpu_custom_call.1} parent=1 // pred_region
      %349 = dma.done [#allocation4], 256
    $region53: #{tpu_custom_call.1} parent=1 // pred_fallthru
      _
    // Predicated region
    $region54: #{tpu_custom_call.1} parent=1 // pred_check
      _
    $region55: #{tpu_custom_call.1} parent=1 // pred_check_branch
      %351 = sbr.rel (0) target = $region57
    $region56: #{tpu_custom_call.1} parent=1 // pred_region
      %352 = dma.done [#allocation12], 128
    $region57: #{tpu_custom_call.1} parent=1 // pred_fallthru
      _
    %353 = vsyncpa [#allocation3], 1
    %354 = vsyncpa [#allocation6], 1
    %355 = vsyncpa [#allocation9], 1
    %356 = vsyncpa [#allocation4], 1
    %357 = vsyncpa [#allocation12], 1

</llo_original>
